<compile_context>
chip_gen: v5e
topology: v5e:2x2
jax: 0.10.0
libtpu: 0.0.40
codegen_flags: <defaults>
</compile_context>

<pallas_src>
import functools

import jax
import jax.numpy as jnp
from jax.experimental import pallas as pl
from jax.experimental.pallas import tpu as pltpu

LANE = 128                      # vreg lane width; feature dims padded to this
_MIB = 1024 * 1024
_VMEM_OPERAND_BUDGET = 36 * _MIB    # conservative operand budget (fits v5e/v6e/v7x)
_VMEM_LIMIT_BYTES = 48 * _MIB       # < v7x 64 MiB physical, > v5e 16 MiB default


def _round_up(x, m):
    return ((x + m - 1) // m) * m


def _plan_tiles(n_pad, stream_w, out_w):
    """Pick (tile_n, tile_k, x_resident) under a cross-generation VMEM budget."""
    # Row tile: as large as possible while keeping >= 2 row tiles so v7x's two
    # TensorCores both get work from the 'parallel' grid axis.
    tile_n = LANE
    for cand in (512, 256):
        if n_pad % cand == 0 and n_pad // cand >= 2:
            tile_n = cand
            break
    # Resident X/H slab (assume the pipeline double-buffers it => 2x).
    x_res_bytes = 2 * n_pad * stream_w * 2
    x_resident = x_res_bytes <= 16 * _MIB
    fixed = ((x_res_bytes if x_resident else 0)
             + tile_n * stream_w * 4           # f32 accumulator scratch
             + 2 * tile_n * out_w * 4          # output tile, double-buffered
             + 2 * _MIB)                       # weights, bias, slack
    tile_k = LANE
    for cand in (2048, 1024, 512, 256):        # largest divisor that fits wins
        if n_pad % cand != 0:
            continue
        a_bytes = 2 * tile_n * cand * 2        # bf16 A tile, double-buffered
        x_bytes = 0 if x_resident else 2 * cand * stream_w * 2
        if fixed + a_bytes + x_bytes <= _VMEM_OPERAND_BUDGET:
            tile_k = cand
            break
    return tile_n, tile_k, x_resident


def _block_sparsity(a_pad, tile_n, tile_k):
    """Per row-tile list of nonzero (tile_n, tile_k) block-columns of A_hat.

    cols[i*nk + k] for k >= nblk[i] repeats the last valid block index so the
    pipeline re-uses the already-fetched A (and streamed X) block -> no DMA,
    while pl.when skips the compute.  Returned flattened (1-D SMEM is cheap).
    """
    n_pad = a_pad.shape[0]
    nr, nk = n_pad // tile_n, n_pad // tile_k
    nz = jnp.any(a_pad.reshape(nr, tile_n, nk, tile_k) != 0, axis=(1, 3))   # [nr, nk]
    nblk = jnp.sum(nz, axis=1, dtype=jnp.int32)                             # [nr]
    order = jnp.argsort(jnp.logical_not(nz).astype(jnp.int32),
                        axis=1).astype(jnp.int32)                           # nnz cols first
    last = jnp.take_along_axis(order, jnp.maximum(nblk - 1, 0)[:, None], axis=1)
    k_idx = jnp.arange(nk, dtype=jnp.int32)[None, :]
    cols = jnp.where(k_idx < nblk[:, None], order, last)
    return nblk, cols.reshape(-1)


# ----------------------------- Pallas kernels ------------------------------- #
def _gcn_agg_kernel(nblk_ref, cols_ref, a_ref, x_ref, b_ref, o_ref, acc_ref,
                    *, tile_k, nk, apply_relu, x_resident):
    """Project-first layer: OUT_tile = [relu]( sum_k A[i, c(k)] @ XW[c(k)] + b )."""
    i = pl.program_id(0)
    k = pl.program_id(1)

    @pl.when(k == 0)
    def _init():
        acc_ref[...] = jnp.zeros_like(acc_ref)

    @pl.when(k < nblk_ref[i])
    def _accumulate():
        if x_resident:
            col = cols_ref[i * nk + k]
            start = pl.multiple_of(col * tile_k, tile_k)
            x_blk = x_ref[pl.ds(start, tile_k), :]
        else:
            x_blk = x_ref[...]
        acc_ref[...] += jnp.dot(a_ref[...], x_blk,
                                preferred_element_type=jnp.float32)

    @pl.when(k == pl.num_programs(1) - 1)
    def _finalize():
        out = acc_ref[...] + b_ref[...]
        if apply_relu:
            out = jnp.maximum(out, 0.0)
        o_ref[...] = out.astype(o_ref.dtype)


def _gcn_agg_proj_kernel(nblk_ref, cols_ref, a_ref, x_ref, w_ref, b_ref, o_ref,
                         acc_ref, *, tile_k, nk, apply_relu, x_resident):
    """Aggregate-first layer: OUT_tile = [relu]( (sum_k A @ X) @ W + b )."""
    i = pl.program_id(0)
    k = pl.program_id(1)

    @pl.when(k == 0)
    def _init():
        acc_ref[...] = jnp.zeros_like(acc_ref)

    @pl.when(k < nblk_ref[i])
    def _accumulate():
        if x_resident:
            col = cols_ref[i * nk + k]
            start = pl.multiple_of(col * tile_k, tile_k)
            x_blk = x_ref[pl.ds(start, tile_k), :]
        else:
            x_blk = x_ref[...]
        acc_ref[...] += jnp.dot(a_ref[...], x_blk,
                                preferred_element_type=jnp.float32)

    @pl.when(k == pl.num_programs(1) - 1)
    def _finalize():
        # bf16 x bf16 MXU with f32 accumulation (single-pass on all generations).
        out = jnp.dot(acc_ref[...].astype(jnp.bfloat16), w_ref[...],
                      preferred_element_type=jnp.float32) + b_ref[...]
        if apply_relu:
            out = jnp.maximum(out, 0.0)
        o_ref[...] = out.astype(o_ref.dtype)


def _project_kernel(x_ref, w_ref, o_ref):
    """Dense node-feature projection tile: O = (X @ W) in bf16 (f32 accumulate)."""
    o_ref[...] = jnp.dot(x_ref[...], w_ref[...],
                         preferred_element_type=jnp.float32).astype(o_ref.dtype)


# ----------------------------- pallas_call wrappers ------------------------- #
def _project(x, w, tile_n):
    n_pad, cin_pad = x.shape
    cout_pad = w.shape[1]
    return pl.pallas_call(
        _project_kernel,
        out_shape=jax.ShapeDtypeStruct((n_pad, cout_pad), jnp.bfloat16),
        grid_spec=pltpu.PrefetchScalarGridSpec(
            num_scalar_prefetch=0,
            grid=(n_pad // tile_n,),
            in_specs=[
                pl.BlockSpec((tile_n, cin_pad), lambda i: (i, 0)),
                pl.BlockSpec((cin_pad, cout_pad), lambda i: (0, 0)),
            ],
            out_specs=pl.BlockSpec((tile_n, cout_pad), lambda i: (i, 0)),
        ),
        compiler_params=pltpu.CompilerParams(
            dimension_semantics=("parallel",),
            vmem_limit_bytes=_VMEM_LIMIT_BYTES),
    )(x, w)


def _aggregate(a_pad, nblk, cols, x, b, w, *, tile_n, tile_k, x_resident,
               apply_relu, out_dtype):
    n_pad = a_pad.shape[0]
    width = x.shape[1]
    cout_pad = b.shape[1] if w is None else w.shape[1]
    nk = n_pad // tile_k
    grid = (n_pad // tile_n, nk)

    a_spec = pl.BlockSpec((tile_n, tile_k),
                          lambda i, k, nb, cl: (i, cl[i * nk + k]))
    if x_resident:
        x_spec = pl.BlockSpec((n_pad, width), lambda i, k, nb, cl: (0, 0))
    else:
        x_spec = pl.BlockSpec((tile_k, width),
                              lambda i, k, nb, cl: (cl[i * nk + k], 0))
    b_spec = pl.BlockSpec((1, cout_pad), lambda i, k, nb, cl: (0, 0))
    out_spec = pl.BlockSpec((tile_n, cout_pad), lambda i, k, nb, cl: (i, 0))

    if w is None:
        kernel = functools.partial(_gcn_agg_kernel, tile_k=tile_k, nk=nk,
                                   apply_relu=apply_relu, x_resident=x_resident)
        in_specs = [a_spec, x_spec, b_spec]
        operands = (nblk, cols, a_pad, x, b)
    else:
        w_spec = pl.BlockSpec((width, cout_pad), lambda i, k, nb, cl: (0, 0))
        kernel = functools.partial(_gcn_agg_proj_kernel, tile_k=tile_k, nk=nk,
                                   apply_relu=apply_relu, x_resident=x_resident)
        in_specs = [a_spec, x_spec, w_spec, b_spec]
        operands = (nblk, cols, a_pad, x, w, b)

    return pl.pallas_call(
        kernel,
        out_shape=jax.ShapeDtypeStruct((n_pad, cout_pad), out_dtype),
        grid_spec=pltpu.PrefetchScalarGridSpec(
            num_scalar_prefetch=2,
            grid=grid,
            in_specs=in_specs,
            out_specs=out_spec,
            scratch_shapes=[pltpu.VMEM((tile_n, width), jnp.float32)],
        ),
        compiler_params=pltpu.CompilerParams(
            dimension_semantics=("parallel", "arbitrary"),
            vmem_limit_bytes=_VMEM_LIMIT_BYTES),
    )(*operands)


def gcn_layer(a_pad, nblk, cols, x, w, b, *, tile_n, tile_k, x_resident,
              apply_relu, out_dtype):
    """One GCNConv layer on padded, lane-dense operands."""
    cin_pad = x.shape[1]
    cout_pad = w.shape[1]
    if cout_pad <= cin_pad:
        # Project-first: the N^2 aggregation streams the narrower (cout) width
        # and the finalize is just bias + activation + cast.
        xw = _project(x, w, tile_n)
        return _aggregate(a_pad, nblk, cols, xw, b, None, tile_n=tile_n,
                          tile_k=tile_k, x_resident=x_resident,
                          apply_relu=apply_relu, out_dtype=out_dtype)
    # Aggregate-first: stream the narrower (cin) width; project once per row
    # tile in the finalize branch.
    return _aggregate(a_pad, nblk, cols, x, b, w, tile_n=tile_n, tile_k=tile_k,
                      x_resident=x_resident, apply_relu=apply_relu,
                      out_dtype=out_dtype)


# ------------------------------ JAX glue ------------------------------------ #
def build_gcn_adjacency_padded(edge_index, num_nodes, n_pad):
    """Symmetric-normalized adjacency with self-loops (GCNConv norm), scattered
    directly into the lane-padded (n_pad, n_pad) buffer and cast to bf16 once."""
    src = edge_index[0]
    dst = edge_index[1]
    loops = jnp.arange(num_nodes, dtype=src.dtype)
    src = jnp.concatenate([src, loops])
    dst = jnp.concatenate([dst, loops])

    deg = jnp.zeros((num_nodes,), jnp.float32).at[dst].add(1.0)
    deg_inv_sqrt = jnp.where(deg > 0, jax.lax.rsqrt(deg), 0.0)
    norm = deg_inv_sqrt[src] * deg_inv_sqrt[dst]

    # out[i] = sum over edges (j -> i) of norm_e * x[j]  =>  A_hat[dst, src]
    a_pad = jnp.zeros((n_pad, n_pad), jnp.float32).at[dst, src].add(norm)
    return a_pad.astype(jnp.bfloat16)


@jax.jit
def gnn_city_predictor(x, edge_index, w1, b1, w2, b2):
    """Full 2-layer GCN forward.  Padding / casting / sparsity glue in JAX,
    all matmuls / aggregation / bias / ReLU in Pallas."""
    n, cin = x.shape
    hid = w1.shape[1]
    cout = w2.shape[1]

    n_pad = _round_up(max(n, LANE), LANE)
    cin_pad = _round_up(cin, LANE)
    hid_pad = _round_up(hid, LANE)
    cout_pad = _round_up(cout, LANE)

    # bf16 streamed operands + bf16 weights, f32 biases and MXU accumulation.
    a_pad = build_gcn_adjacency_padded(edge_index, n, n_pad)
    x_pad = jnp.zeros((n_pad, cin_pad), jnp.bfloat16).at[:n, :cin].set(
        x.astype(jnp.bfloat16))
    w1_pad = jnp.zeros((cin_pad, hid_pad), jnp.bfloat16).at[:cin, :hid].set(
        w1.astype(jnp.bfloat16))
    b1_pad = jnp.zeros((1, hid_pad), jnp.float32).at[0, :hid].set(b1)
    w2_pad = jnp.zeros((hid_pad, cout_pad), jnp.bfloat16).at[:hid, :cout].set(
        w2.astype(jnp.bfloat16))
    b2_pad = jnp.zeros((1, cout_pad), jnp.float32).at[0, :cout].set(b2)

    # One tiling + block-sparsity table shared by both layers (same A_hat).
    stream_w = max(min(cin_pad, hid_pad), min(hid_pad, cout_pad))
    out_w = max(hid_pad, cout_pad)
    tile_n, tile_k, x_resident = _plan_tiles(n_pad, stream_w, out_w)
    nblk, cols = _block_sparsity(a_pad, tile_n, tile_k)

    # NOTE: padded rows of H are relu(b1) (the bias broadcasts to every row);
    # this is safe only because the padded COLUMNS of A_hat are guaranteed zero,
    # so padded nodes never contribute to real outputs.
    h = gcn_layer(a_pad, nblk, cols, x_pad, w1_pad, b1_pad,
                  tile_n=tile_n, tile_k=tile_k, x_resident=x_resident,
                  apply_relu=True, out_dtype=jnp.bfloat16)
    out = gcn_layer(a_pad, nblk, cols, h, w2_pad, b2_pad,
                    tile_n=tile_n, tile_k=tile_k, x_resident=x_resident,
                    apply_relu=False, out_dtype=jnp.float32)
    return out[:n, :cout]


def init_params(key, in_channels, hidden_channels, out_channels):
    """Deterministic Glorot-style init; weights stored as [C_in, C_out]."""
    k1, k2 = jax.random.split(key)
    s1 = (6.0 / (in_channels + hidden_channels)) ** 0.5
    s2 = (6.0 / (hidden_channels + out_channels)) ** 0.5
    w1 = jax.random.uniform(k1, (in_channels, hidden_channels), jnp.float32, -s1, s1)
    w2 = jax.random.uniform(k2, (hidden_channels, out_channels), jnp.float32, -s2, s2)
    b1 = jnp.zeros((hidden_channels,), jnp.float32)
    b2 = jnp.zeros((out_channels,), jnp.float32)
    return w1, b1, w2, b2


# ----------------------------- pure-JAX reference --------------------------- #
def reference_adjacency(edge_index, num_nodes):
    src = edge_index[0]
    dst = edge_index[1]
    loops = jnp.arange(num_nodes, dtype=src.dtype)
    src = jnp.concatenate([src, loops])
    dst = jnp.concatenate([dst, loops])
    deg = jnp.zeros((num_nodes,), jnp.float32).at[dst].add(1.0)
    dis = jnp.where(deg > 0, jax.lax.rsqrt(deg), 0.0)
    norm = dis[src] * dis[dst]
    return jnp.zeros((num_nodes, num_nodes), jnp.float32).at[dst, src].add(norm)


def reference_forward(x, edge_index, w1, b1, w2, b2):
    a_hat = reference_adjacency(edge_index, x.shape[0])
    h = jnp.maximum(a_hat @ (x @ w1) + b1, 0.0)
    return a_hat @ (h @ w2) + b2


if __name__ == "__main__":
    key = jax.random.PRNGKey(0)
    k_x, k_e, k_p, k_x2, k_e2 = jax.random.split(key, 5)

    num_nodes, in_channels, hidden_channels, out_channels, num_edges = 16, 8, 32, 8, 40

    x = jax.random.normal(k_x, (num_nodes, in_channels), jnp.float32)
    edge_index = jax.random.randint(k_e, (2, num_edges), 0, num_nodes, jnp.int32)
    w1, b1, w2, b2 = init_params(k_p, in_channels, hidden_channels, out_channels)

    out = gnn_city_predictor(x, edge_index, w1, b1, w2, b2)
    out = jax.block_until_ready(out)
    assert out.shape == (num_nodes, out_channels)

    # bf16-streamed operands with f32 accumulation -> loosened tolerance.
    ref = reference_forward(x, edge_index, w1, b1, w2, b2)
    assert jnp.allclose(out, ref, atol=5e-2, rtol=5e-2), \
        float(jnp.max(jnp.abs(out - ref)))

    # Second (still small) problem that exercises the multi-tile block-sparse
    # reduction path and the resident-X dynamic slicing.
    n2, e2 = 300, 900
    x2 = jax.random.normal(k_x2, (n2, in_channels), jnp.float32)
    edge_index2 = jax.random.randint(k_e2, (2, e2), 0, n2, jnp.int32)
    out2 = jax.block_until_ready(gnn_city_predictor(x2, edge_index2, w1, b1, w2, b2))
    ref2 = reference_forward(x2, edge_index2, w1, b1, w2, b2)
    assert out2.shape == (n2, out_channels)
    assert jnp.allclose(out2, ref2, atol=5e-2, rtol=5e-2), \
        float(jnp.max(jnp.abs(out2 - ref2)))

    print("KERNEL_OK")
</pallas_src>

<mosaic_0001>
module attributes {stable_mosaic.version = 11 : i64} {
  func.func @_project_kernel(%arg0: i32, %arg1: memref<128x128xbf16, #tpu.memory_space<vmem>>, %arg2: memref<128x128xbf16, #tpu.memory_space<vmem>>, %arg3: memref<128x128xbf16, #tpu.memory_space<vmem>>) attributes {dimension_semantics = [#tpu.dimension_semantics<parallel>], iteration_bounds = array<i64: 1>, scalar_prefetch = 0 : i64, scratch_operands = 0 : i64, tpu.core_type = #tpu.core_type<tc>, window_params = [{transform_indices = @transform_0, window_bounds = array<i64: 128, 128>}, {pipeline_mode = #tpu.pipeline_mode<synchronous>, transform_indices = @transform_1, window_bounds = array<i64: 128, 128>}, {transform_indices = @transform_2, window_bounds = array<i64: 128, 128>}]} {
    %c0 = arith.constant 0 : index
    %c0_0 = arith.constant 0 : index
    %0 = vector.load %arg1[%c0, %c0_0] : memref<128x128xbf16, #tpu.memory_space<vmem>>, vector<128x128xbf16>
    %c0_1 = arith.constant 0 : index
    %c0_2 = arith.constant 0 : index
    %1 = vector.load %arg2[%c0_1, %c0_2] : memref<128x128xbf16, #tpu.memory_space<vmem>>, vector<128x128xbf16>
    %cst = arith.constant dense<0.000000e+00> : vector<128x128xf32>
    %2 = tpu.matmul %0, %1, %cst {dimension_numbers = #tpu.dot_dimension_numbers<[1], [0], [0], [1], [0, 0, 1, 1], [], []>} : vector<128x128xbf16>, vector<128x128xbf16>, vector<128x128xf32> -> vector<128x128xf32>
    %3 = arith.truncf %2 : vector<128x128xf32> to vector<128x128xbf16>
    %c0_3 = arith.constant 0 : index
    %c0_4 = arith.constant 0 : index
    %4 = vector.load %arg3[%c0_3, %c0_4] : memref<128x128xbf16, #tpu.memory_space<vmem>>, vector<128x128xbf16>
    tpu.vector_store %arg3[%c0_3, %c0_4], %3 {strides = array<i32>} : memref<128x128xbf16, #tpu.memory_space<vmem>>, vector<128x128xbf16>,
    return
  }
  func.func @transform_0(%arg0: i32) -> (i32, i32) {
    %c0_i32 = arith.constant 0 : i32
    %c0_i32_0 = arith.constant 0 : i32
    return %arg0, %c0_i32 : i32, i32
  }
  func.func @transform_1(%arg0: i32) -> (i32, i32) {
    %c0_i32 = arith.constant 0 : i32
    %c0_i32_0 = arith.constant 0 : i32
    %c0_i32_1 = arith.constant 0 : i32
    return %c0_i32, %c0_i32_0 : i32, i32
  }
  func.func @transform_2(%arg0: i32) -> (i32, i32) {
    %c0_i32 = arith.constant 0 : i32
    %c0_i32_0 = arith.constant 0 : i32
    return %arg0, %c0_i32 : i32, i32
  }
}

module attributes {stable_mosaic.version = 11 : i64} {
  func.func @_gcn_agg_kernel(%arg0: i32, %arg1: i32, %arg2: memref<1xi32, #tpu.memory_space<smem>>, %arg3: memref<1xi32, #tpu.memory_space<smem>>, %arg4: memref<128x128xbf16, #tpu.memory_space<vmem>>, %arg5: memref<128x128xbf16, #tpu.memory_space<vmem>>, %arg6: memref<1x128xf32, #tpu.memory_space<vmem>>, %arg7: memref<128x128xbf16, #tpu.memory_space<vmem>>, %arg8: memref<128x128xf32, #tpu.memory_space<vmem>>) attributes {dimension_semantics = [#tpu.dimension_semantics<parallel>, #tpu.dimension_semantics<arbitrary>], iteration_bounds = array<i64: 1, 1>, scalar_prefetch = 2 : i64, scratch_operands = 1 : i64, tpu.core_type = #tpu.core_type<tc>, window_params = [{transform_indices = @transform_0, window_bounds = array<i64: 128, 128>}, {pipeline_mode = #tpu.pipeline_mode<synchronous>, transform_indices = @transform_1, window_bounds = array<i64: 128, 128>}, {pipeline_mode = #tpu.pipeline_mode<synchronous>, transform_indices = @transform_2, window_bounds = array<i64: 1, 128>}, {transform_indices = @transform_3, window_bounds = array<i64: 128, 128>}]} {
    %c0_i32 = arith.constant 0 : i32
    %0 = arith.cmpi eq, %arg1, %c0_i32 : i32
    %1 = arith.extui %0 : i1 to i32
    %c0_i32_0 = arith.constant 0 : i32
    %2 = arith.cmpi ne, %1, %c0_i32_0 : i32
    scf.if %2 {
      %cst = arith.constant 0.000000e+00 : f32
      %11 = vector.broadcast %cst : f32 to vector<128x128xf32>
      %c0 = arith.constant 0 : index
      %c0_4 = arith.constant 0 : index
      %12 = vector.load %arg8[%c0, %c0_4] : memref<128x128xf32, #tpu.memory_space<vmem>>, vector<128x128xf32>
      tpu.vector_store %arg8[%c0, %c0_4], %11 {strides = array<i32>} : memref<128x128xf32, #tpu.memory_space<vmem>>, vector<128x128xf32>,
    } else {
    }
    %3 = arith.index_cast %arg0 : i32 to index
    %4 = memref.load %arg2[%3] : memref<1xi32, #tpu.memory_space<smem>>
    %5 = arith.cmpi slt, %arg1, %4 : i32
    %6 = arith.extui %5 : i1 to i32
    %c0_i32_1 = arith.constant 0 : i32
    %7 = arith.cmpi ne, %6, %c0_i32_1 : i32
    scf.if %7 {
      %c1_i32 = arith.constant 1 : i32
      %11 = arith.muli %arg0, %c1_i32 : i32
      %12 = arith.addi %11, %arg1 : i32
      %13 = arith.index_cast %12 : i32 to index
      %14 = memref.load %arg3[%13] : memref<1xi32, #tpu.memory_space<smem>>
      %c128_i32 = arith.constant 128 : i32
      %15 = arith.muli %14, %c128_i32 : i32
      %16 = tpu.assume_multiple %15, 128 : i32
      %17 = arith.index_cast %16 : i32 to index
      %c0 = arith.constant 0 : index
      %18 = vector.load %arg5[%17, %c0] : memref<128x128xbf16, #tpu.memory_space<vmem>>, vector<128x128xbf16>
      %c0_4 = arith.constant 0 : index
      %c0_5 = arith.constant 0 : index
      %19 = vector.load %arg8[%c0_4, %c0_5] : memref<128x128xf32, #tpu.memory_space<vmem>>, vector<128x128xf32>
      %c0_6 = arith.constant 0 : index
      %c0_7 = arith.constant 0 : index
      %20 = vector.load %arg4[%c0_6, %c0_7] : memref<128x128xbf16, #tpu.memory_space<vmem>>, vector<128x128xbf16>
      %cst = arith.constant dense<0.000000e+00> : vector<128x128xf32>
      %21 = tpu.matmul %20, %18, %cst {dimension_numbers = #tpu.dot_dimension_numbers<[1], [0], [0], [1], [0, 0, 1, 1], [], []>} : vector<128x128xbf16>, vector<128x128xbf16>, vector<128x128xf32> -> vector<128x128xf32>
      %22 = arith.addf %19, %21 : vector<128x128xf32>
      %c0_8 = arith.constant 0 : index
      %c0_9 = arith.constant 0 : index
      %23 = vector.load %arg8[%c0_8, %c0_9] : memref<128x128xf32, #tpu.memory_space<vmem>>, vector<128x128xf32>
      tpu.vector_store %arg8[%c0_8, %c0_9], %22 {strides = array<i32>} : memref<128x128xf32, #tpu.memory_space<vmem>>, vector<128x128xf32>,
    } else {
    }
    %c0_i32_2 = arith.constant 0 : i32
    %8 = arith.cmpi eq, %arg1, %c0_i32_2 : i32
    %9 = arith.extui %8 : i1 to i32
    %c0_i32_3 = arith.constant 0 : i32
    %10 = arith.cmpi ne, %9, %c0_i32_3 : i32
    scf.if %10 {
      %c0 = arith.constant 0 : index
      %c0_4 = arith.constant 0 : index
      %11 = vector.load %arg8[%c0, %c0_4] : memref<128x128xf32, #tpu.memory_space<vmem>>, vector<128x128xf32>
      %c0_5 = arith.constant 0 : index
      %c0_6 = arith.constant 0 : index
      %12 = vector.load %arg6[%c0_5, %c0_6] : memref<1x128xf32, #tpu.memory_space<vmem>>, vector<1x128xf32>
      %13 = vector.broadcast %12 : vector<1x128xf32> to vector<128x128xf32>
      %14 = arith.addf %11, %13 : vector<128x128xf32>
      %cst = arith.constant 0.000000e+00 : f32
      %15 = vector.broadcast %cst : f32 to vector<128x128xf32>
      %16 = arith.maximumf %14, %15 : vector<128x128xf32>
      %17 = arith.truncf %16 : vector<128x128xf32> to vector<128x128xbf16>
      %c0_7 = arith.constant 0 : index
      %c0_8 = arith.constant 0 : index
      %18 = vector.load %arg7[%c0_7, %c0_8] : memref<128x128xbf16, #tpu.memory_space<vmem>>, vector<128x128xbf16>
      tpu.vector_store %arg7[%c0_7, %c0_8], %17 {strides = array<i32>} : memref<128x128xbf16, #tpu.memory_space<vmem>>, vector<128x128xbf16>,
    } else {
    }
    return
  }
  func.func @transform_0(%arg0: i32, %arg1: i32, %arg2: memref<1xi32, #tpu.memory_space<smem>>, %arg3: memref<1xi32, #tpu.memory_space<smem>>) -> (i32, i32) {
    %c1_i32 = arith.constant 1 : i32
    %0 = arith.muli %arg0, %c1_i32 : i32
    %1 = arith.addi %0, %arg1 : i32
    %2 = arith.index_cast %1 : i32 to index
    %3 = memref.load %arg3[%2] : memref<1xi32, #tpu.memory_space<smem>>
    %c0_i32 = arith.constant 0 : i32
    return %arg0, %3 : i32, i32
  }
  func.func @transform_1(%arg0: i32, %arg1: i32, %arg2: memref<1xi32, #tpu.memory_space<smem>>, %arg3: memref<1xi32, #tpu.memory_space<smem>>) -> (i32, i32) {
    %c0_i32 = arith.constant 0 : i32
    %c0_i32_0 = arith.constant 0 : i32
    %c0_i32_1 = arith.constant 0 : i32
    return %c0_i32, %c0_i32_0 : i32, i32
  }
  func.func @transform_2(%arg0: i32, %arg1: i32, %arg2: memref<1xi32, #tpu.memory_space<smem>>, %arg3: memref<1xi32, #tpu.memory_space<smem>>) -> (i32, i32) {
    %c0_i32 = arith.constant 0 : i32
    %c0_i32_0 = arith.constant 0 : i32
    %c0_i32_1 = arith.constant 0 : i32
    return %c0_i32, %c0_i32_0 : i32, i32
  }
  func.func @transform_3(%arg0: i32, %arg1: i32, %arg2: memref<1xi32, #tpu.memory_space<smem>>, %arg3: memref<1xi32, #tpu.memory_space<smem>>) -> (i32, i32) {
    %c0_i32 = arith.constant 0 : i32
    %c0_i32_0 = arith.constant 0 : i32
    return %arg0, %c0_i32 : i32, i32
  }
}

module attributes {stable_mosaic.version = 11 : i64} {
  func.func @_gcn_agg_kernel(%arg0: i32, %arg1: i32, %arg2: memref<1xi32, #tpu.memory_space<smem>>, %arg3: memref<1xi32, #tpu.memory_space<smem>>, %arg4: memref<128x128xbf16, #tpu.memory_space<vmem>>, %arg5: memref<128x128xbf16, #tpu.memory_space<vmem>>, %arg6: memref<1x128xf32, #tpu.memory_space<vmem>>, %arg7: memref<128x128xf32, #tpu.memory_space<vmem>>, %arg8: memref<128x128xf32, #tpu.memory_space<vmem>>) attributes {dimension_semantics = [#tpu.dimension_semantics<parallel>, #tpu.dimension_semantics<arbitrary>], iteration_bounds = array<i64: 1, 1>, scalar_prefetch = 2 : i64, scratch_operands = 1 : i64, tpu.core_type = #tpu.core_type<tc>, window_params = [{transform_indices = @transform_0, window_bounds = array<i64: 128, 128>}, {pipeline_mode = #tpu.pipeline_mode<synchronous>, transform_indices = @transform_1, window_bounds = array<i64: 128, 128>}, {pipeline_mode = #tpu.pipeline_mode<synchronous>, transform_indices = @transform_2, window_bounds = array<i64: 1, 128>}, {transform_indices = @transform_3, window_bounds = array<i64: 128, 128>}]} {
    %c0_i32 = arith.constant 0 : i32
    %0 = arith.cmpi eq, %arg1, %c0_i32 : i32
    %1 = arith.extui %0 : i1 to i32
    %c0_i32_0 = arith.constant 0 : i32
    %2 = arith.cmpi ne, %1, %c0_i32_0 : i32
    scf.if %2 {
      %cst = arith.constant 0.000000e+00 : f32
      %11 = vector.broadcast %cst : f32 to vector<128x128xf32>
      %c0 = arith.constant 0 : index
      %c0_4 = arith.constant 0 : index
      %12 = vector.load %arg8[%c0, %c0_4] : memref<128x128xf32, #tpu.memory_space<vmem>>, vector<128x128xf32>
      tpu.vector_store %arg8[%c0, %c0_4], %11 {strides = array<i32>} : memref<128x128xf32, #tpu.memory_space<vmem>>, vector<128x128xf32>,
    } else {
    }
    %3 = arith.index_cast %arg0 : i32 to index
    %4 = memref.load %arg2[%3] : memref<1xi32, #tpu.memory_space<smem>>
    %5 = arith.cmpi slt, %arg1, %4 : i32
    %6 = arith.extui %5 : i1 to i32
    %c0_i32_1 = arith.constant 0 : i32
    %7 = arith.cmpi ne, %6, %c0_i32_1 : i32
    scf.if %7 {
      %c1_i32 = arith.constant 1 : i32
      %11 = arith.muli %arg0, %c1_i32 : i32
      %12 = arith.addi %11, %arg1 : i32
      %13 = arith.index_cast %12 : i32 to index
      %14 = memref.load %arg3[%13] : memref<1xi32, #tpu.memory_space<smem>>
      %c128_i32 = arith.constant 128 : i32
      %15 = arith.muli %14, %c128_i32 : i32
      %16 = tpu.assume_multiple %15, 128 : i32
      %17 = arith.index_cast %16 : i32 to index
      %c0 = arith.constant 0 : index
      %18 = vector.load %arg5[%17, %c0] : memref<128x128xbf16, #tpu.memory_space<vmem>>, vector<128x128xbf16>
      %c0_4 = arith.constant 0 : index
      %c0_5 = arith.constant 0 : index
      %19 = vector.load %arg8[%c0_4, %c0_5] : memref<128x128xf32, #tpu.memory_space<vmem>>, vector<128x128xf32>
      %c0_6 = arith.constant 0 : index
      %c0_7 = arith.constant 0 : index
      %20 = vector.load %arg4[%c0_6, %c0_7] : memref<128x128xbf16, #tpu.memory_space<vmem>>, vector<128x128xbf16>
      %cst = arith.constant dense<0.000000e+00> : vector<128x128xf32>
      %21 = tpu.matmul %20, %18, %cst {dimension_numbers = #tpu.dot_dimension_numbers<[1], [0], [0], [1], [0, 0, 1, 1], [], []>} : vector<128x128xbf16>, vector<128x128xbf16>, vector<128x128xf32> -> vector<128x128xf32>
      %22 = arith.addf %19, %21 : vector<128x128xf32>
      %c0_8 = arith.constant 0 : index
      %c0_9 = arith.constant 0 : index
      %23 = vector.load %arg8[%c0_8, %c0_9] : memref<128x128xf32, #tpu.memory_space<vmem>>, vector<128x128xf32>
      tpu.vector_store %arg8[%c0_8, %c0_9], %22 {strides = array<i32>} : memref<128x128xf32, #tpu.memory_space<vmem>>, vector<128x128xf32>,
    } else {
    }
    %c0_i32_2 = arith.constant 0 : i32
    %8 = arith.cmpi eq, %arg1, %c0_i32_2 : i32
    %9 = arith.extui %8 : i1 to i32
    %c0_i32_3 = arith.constant 0 : i32
    %10 = arith.cmpi ne, %9, %c0_i32_3 : i32
    scf.if %10 {
      %c0 = arith.constant 0 : index
      %c0_4 = arith.constant 0 : index
      %11 = vector.load %arg8[%c0, %c0_4] : memref<128x128xf32, #tpu.memory_space<vmem>>, vector<128x128xf32>
      %c0_5 = arith.constant 0 : index
      %c0_6 = arith.constant 0 : index
      %12 = vector.load %arg6[%c0_5, %c0_6] : memref<1x128xf32, #tpu.memory_space<vmem>>, vector<1x128xf32>
      %13 = vector.broadcast %12 : vector<1x128xf32> to vector<128x128xf32>
      %14 = arith.addf %11, %13 : vector<128x128xf32>
      %c0_7 = arith.constant 0 : index
      %c0_8 = arith.constant 0 : index
      %15 = vector.load %arg7[%c0_7, %c0_8] : memref<128x128xf32, #tpu.memory_space<vmem>>, vector<128x128xf32>
      tpu.vector_store %arg7[%c0_7, %c0_8], %14 {strides = array<i32>} : memref<128x128xf32, #tpu.memory_space<vmem>>, vector<128x128xf32>,
    } else {
    }
    return
  }
  func.func @transform_0(%arg0: i32, %arg1: i32, %arg2: memref<1xi32, #tpu.memory_space<smem>>, %arg3: memref<1xi32, #tpu.memory_space<smem>>) -> (i32, i32) {
    %c1_i32 = arith.constant 1 : i32
    %0 = arith.muli %arg0, %c1_i32 : i32
    %1 = arith.addi %0, %arg1 : i32
    %2 = arith.index_cast %1 : i32 to index
    %3 = memref.load %arg3[%2] : memref<1xi32, #tpu.memory_space<smem>>
    %c0_i32 = arith.constant 0 : i32
    return %arg0, %3 : i32, i32
  }
  func.func @transform_1(%arg0: i32, %arg1: i32, %arg2: memref<1xi32, #tpu.memory_space<smem>>, %arg3: memref<1xi32, #tpu.memory_space<smem>>) -> (i32, i32) {
    %c0_i32 = arith.constant 0 : i32
    %c0_i32_0 = arith.constant 0 : i32
    %c0_i32_1 = arith.constant 0 : i32
    return %c0_i32, %c0_i32_0 : i32, i32
  }
  func.func @transform_2(%arg0: i32, %arg1: i32, %arg2: memref<1xi32, #tpu.memory_space<smem>>, %arg3: memref<1xi32, #tpu.memory_space<smem>>) -> (i32, i32) {
    %c0_i32 = arith.constant 0 : i32
    %c0_i32_0 = arith.constant 0 : i32
    %c0_i32_1 = arith.constant 0 : i32
    return %c0_i32, %c0_i32_0 : i32, i32
  }
  func.func @transform_3(%arg0: i32, %arg1: i32, %arg2: memref<1xi32, #tpu.memory_space<smem>>, %arg3: memref<1xi32, #tpu.memory_space<smem>>) -> (i32, i32) {
    %c0_i32 = arith.constant 0 : i32
    %c0_i32_0 = arith.constant 0 : i32
    return %arg0, %c0_i32 : i32, i32
  }
}

</mosaic_0001>

<llo_original>
// kernel: mul.1
$region0: #{mul.1}
  #allocation0 [shape = 's32[1]{0}', space=sflag, size = 0x4, scoped, tag = 'scoped memory for mul.1']
  %s0 = inlined_call_operand.vmem [shape: f32[56], index: 0, kind: input, shape index: {}]
  %s1 = inlined_call_operand.vmem [shape: f32[56], index: 1, kind: input, shape index: {}]
  %s2 = inlined_call_operand.vmem [shape: f32[56], index: 2, kind: output, shape index: {}]
  %v3 = vld [vmem:[%s0] sm:$0x1]
  %v4 = vld [vmem:[%s1] sm:$0x1]
  %5 = xla_tuple %v3, %v4
  %6 = xla_tuple %5
  %v7 = vmul.f32 %v3, %v4
  %8 = xla_tuple %v7
  %9 = vst [vmem:[%s2] sm:$0x1] %v7

// kernel: gnn_city_predictor.7
$region0: #{gnn_city_predictor.7}
  #allocation0 [shape = 'u32[]', space=smem, size = 0x4, offset = 0x4, fixed_abs, tag = 'smem constant byte address 0x4 - core index']
  #allocation1 [shape = 'u32[72,128]{1,0:T(1,128)}', space=vmem, size = 0x9000, scoped, tag = 'internal scratch']
  #allocation2 [shape = 'f32[128,128]{1,0:T(8,128)}', space=vmem, size = 0x10000, scoped, tag = 'scratch operand']
  #allocation3 [shape = 's32[1]{0}', space=sflag, size = 0x4, scoped, tag = 'scoped memory for gnn_city_predictor.7']
  #allocation4 [shape = 's32[1]{0:T(128)S(6)}', space=smem, size = 0x200, scoped, tag = 'prefetched SMEM operand 0']
  #allocation5 [shape = 's32[1]{0:T(128)S(6)}', space=smem, size = 0x200, scoped, tag = 'prefetched SMEM operand 1']
  %s0 = inlined_call_operand.<no memory space> [shape: s32[1], index: 0, kind: input, shape index: {}]
  %s1 = inlined_call_operand.<no memory space> [shape: s32[1], index: 1, kind: input, shape index: {}]
  %s2 = inlined_call_operand.vmem [shape: bf16[128,128], index: 2, kind: input, shape index: {}]
  %s3 = inlined_call_operand.vmem [shape: bf16[128,128], index: 3, kind: input, shape index: {}]
  %s4 = inlined_call_operand.vmem [shape: f32[1,128], index: 4, kind: input, shape index: {}]
  %s5 = inlined_call_operand.vmem [shape: f32[128,128], index: 5, kind: output, shape index: {}]
  %s6 = sld [smem:[#allocation0]]
  $region34: #{gnn_city_predictor.7} parent=0
    _
  %s8 = ssub.s32 1, %s6
  %s9 = scalar_select 0, %s8, %s6
  %10 = sst [smem:[#allocation4]] %s0
  %11 = sst [smem:[#allocation5]] %s1
  // Predicated region
  $region2: #{gnn_city_predictor.7} parent=0 // pred_check
    _
  $region3: #{gnn_city_predictor.7} parent=0 // pred_check_branch
    %13 = sbr.rel (0) target = $region5
  $region4: #{gnn_city_predictor.7} parent=0 // pred_region
    %s14 = sadd.s32 0, 0
    %s15 = sld [smem:[#allocation5 + %s14]]
    %p16 = scmp.lt.s32.totalorder %s15, 0
    %s17 = scalar_select %p16, %s15, 0
    %s18 = smul.addr %s17, 4
    %s19 = scalar_lea.vmem %s2, %s18
    %s20 = sadd.s32 0, 0
    %s21 = sld [smem:[#allocation5 + %s20]]
  $region5: #{gnn_city_predictor.7} parent=0 // pred_fallthru
    _
  // Predicated region
  $region6: #{gnn_city_predictor.7} parent=0 // pred_check
    _
  $region7: #{gnn_city_predictor.7} parent=0 // pred_check_branch
    %23 = sbr.rel (0) target = $region9
  $region8: #{gnn_city_predictor.7} parent=0 // pred_region
    _
  $region9: #{gnn_city_predictor.7} parent=0 // pred_fallthru
    _
  // Predicated region
  $region10: #{gnn_city_predictor.7} parent=0 // pred_check
    _
  $region11: #{gnn_city_predictor.7} parent=0 // pred_check_branch
    %25 = sbr.rel (0) target = $region13
  $region12: #{gnn_city_predictor.7} parent=0 // pred_region
    _
  $region13: #{gnn_city_predictor.7} parent=0 // pred_fallthru
    _
  %s26 = sadd.s32 0, 0
  %s27 = sld [smem:[#allocation5 + %s26]]
  %p28 = scmp.lt.s32.totalorder %s27, 0
  %s29 = scalar_select %p28, %s27, 0
  %s30 = smul.addr %s29, 4
  %s31 = scalar_lea.vmem %s2, %s30
  %s32 = sadd.s32 0, 0
  %s33 = sld [smem:[#allocation5 + %s32]]
  %p34 = scmp.lt.s32.totalorder %s33, 0
  %s35 = scalar_select %p34, %s33, 0
  %s36 = smul.addr %s35, 4
  %s37 = scalar_lea.vmem %s2, %s36
  %s38 = sadd.s32 0, 0
  %s39 = sld [smem:[#allocation5 + %s38]]
  %p40 = scmp.eq.s32.totalorder 0, 0
  // Predicated region
  $region14: #{gnn_city_predictor.7} parent=0 // pred_check
    %p41 = pneg %p40
  $region15: #{gnn_city_predictor.7} parent=0 // pred_check_branch
    %43 = sbr.rel (%p41) target = $region17
  $region16: #{gnn_city_predictor.7} parent=0 // pred_region
    %44 = vst [vmem:[#allocation2] sm:$0xff] 0.0
    %45 = vst [vmem:[#allocation2 + $0x8] sm:$0xff] 0.0
    %46 = vst [vmem:[#allocation2 + $0x10] sm:$0xff] 0.0
    %47 = vst [vmem:[#allocation2 + $0x18] sm:$0xff] 0.0
    %48 = vst [vmem:[#allocation2 + $0x20] sm:$0xff] 0.0
    %49 = vst [vmem:[#allocation2 + $0x28] sm:$0xff] 0.0
    %50 = vst [vmem:[#allocation2 + $0x30] sm:$0xff] 0.0
    %51 = vst [vmem:[#allocation2 + $0x38] sm:$0xff] 0.0
    %52 = vst [vmem:[#allocation2 + $0x40] sm:$0xff] 0.0
    %53 = vst [vmem:[#allocation2 + $0x48] sm:$0xff] 0.0
    %54 = vst [vmem:[#allocation2 + $0x50] sm:$0xff] 0.0
    %55 = vst [vmem:[#allocation2 + $0x58] sm:$0xff] 0.0
    %56 = vst [vmem:[#allocation2 + $0x60] sm:$0xff] 0.0
    %57 = vst [vmem:[#allocation2 + $0x68] sm:$0xff] 0.0
    %58 = vst [vmem:[#allocation2 + $0x70] sm:$0xff] 0.0
    %59 = vst [vmem:[#allocation2 + $0x78] sm:$0xff] 0.0
  $region17: #{gnn_city_predictor.7} parent=0 // pred_fallthru
    _
  %s60 = sld [smem:[#allocation4]]
  %p61 = scmp.lt.s32.totalorder 0, %s60
  // Predicated region
  $region18: #{gnn_city_predictor.7} parent=0 // pred_check
    %p62 = pneg %p61
  $region19: #{gnn_city_predictor.7} parent=0 // pred_check_branch
    %64 = sbr.rel (%p62) target = $region21
  $region20: #{gnn_city_predictor.7} parent=0 // pred_region
    %s65 = sadd.s32 0, 0
    %s66 = sld [smem:[#allocation5 + %s65]]
    %s67 = smul.u32 %s66, 128
    %s68 = sshra.s32 %s67, 3
    %s69 = sand.u32 %s67, 7
    %s70 = smul.addr %s68, 4
    %s71 = scalar_lea.vmem %s3, %s70
    %v72 = vld [vmem:[%s71] sm:$0xf]
    %v73 = vld [vmem:[%s71 + $0x4] sm:$0xf]
    %v74 = vld [vmem:[%s71 + $0x8] sm:$0xf]
    %v75 = vld [vmem:[%s71 + $0xc] sm:$0xf]
    %v76 = vld [vmem:[%s71 + $0x10] sm:$0xf]
    %v77 = vld [vmem:[%s71 + $0x14] sm:$0xf]
    %v78 = vld [vmem:[%s71 + $0x18] sm:$0xf]
    %v79 = vld [vmem:[%s71 + $0x1c] sm:$0xf]
    %v80 = vld [vmem:[%s71 + $0x20] sm:$0xf]
    %v81 = vld [vmem:[%s71 + $0x24] sm:$0xf]
    %v82 = vld [vmem:[%s71 + $0x28] sm:$0xf]
    %v83 = vld [vmem:[%s71 + $0x2c] sm:$0xf]
    %v84 = vld [vmem:[%s71 + $0x30] sm:$0xf]
    %v85 = vld [vmem:[%s71 + $0x34] sm:$0xf]
    %v86 = vld [vmem:[%s71 + $0x38] sm:$0xf]
    %v87 = vld [vmem:[%s71 + $0x3c] sm:$0xf]
    %v88 = vld [vmem:[#allocation2] sm:$0xff]
    %v89 = vld [vmem:[#allocation2 + $0x8] sm:$0xff]
    %v90 = vld [vmem:[#allocation2 + $0x10] sm:$0xff]
    %v91 = vld [vmem:[#allocation2 + $0x18] sm:$0xff]
    %v92 = vld [vmem:[#allocation2 + $0x20] sm:$0xff]
    %v93 = vld [vmem:[#allocation2 + $0x28] sm:$0xff]
    %v94 = vld [vmem:[#allocation2 + $0x30] sm:$0xff]
    %v95 = vld [vmem:[#allocation2 + $0x38] sm:$0xff]
    %v96 = vld [vmem:[#allocation2 + $0x40] sm:$0xff]
    %v97 = vld [vmem:[#allocation2 + $0x48] sm:$0xff]
    %v98 = vld [vmem:[#allocation2 + $0x50] sm:$0xff]
    %v99 = vld [vmem:[#allocation2 + $0x58] sm:$0xff]
    %v100 = vld [vmem:[#allocation2 + $0x60] sm:$0xff]
    %v101 = vld [vmem:[#allocation2 + $0x68] sm:$0xff]
    %v102 = vld [vmem:[#allocation2 + $0x70] sm:$0xff]
    %v103 = vld [vmem:[#allocation2 + $0x78] sm:$0xff]
    %v104 = vld [vmem:[%s37] sm:$0xf]
    %v105 = vld [vmem:[%s37 + $0x4] sm:$0xf]
    %v106 = vld [vmem:[%s37 + $0x8] sm:$0xf]
    %v107 = vld [vmem:[%s37 + $0xc] sm:$0xf]
    %v108 = vld [vmem:[%s37 + $0x10] sm:$0xf]
    %v109 = vld [vmem:[%s37 + $0x14] sm:$0xf]
    %v110 = vld [vmem:[%s37 + $0x18] sm:$0xf]
    %v111 = vld [vmem:[%s37 + $0x1c] sm:$0xf]
    %v112 = vld [vmem:[%s37 + $0x20] sm:$0xf]
    %v113 = vld [vmem:[%s37 + $0x24] sm:$0xf]
    %v114 = vld [vmem:[%s37 + $0x28] sm:$0xf]
    %v115 = vld [vmem:[%s37 + $0x2c] sm:$0xf]
    %v116 = vld [vmem:[%s37 + $0x30] sm:$0xf]
    %v117 = vld [vmem:[%s37 + $0x34] sm:$0xf]
    %v118 = vld [vmem:[%s37 + $0x38] sm:$0xf]
    %v119 = vld [vmem:[%s37 + $0x3c] sm:$0xf]
    %v136 = vunpack.c.l.b16 %v104
    %v137 = vunpack.c.l.b16 %v105
    %v138 = vunpack.c.l.b16 %v106
    %v139 = vunpack.c.l.b16 %v107
    %v140 = vunpack.c.l.b16 %v108
    %v141 = vunpack.c.l.b16 %v109
    %v142 = vunpack.c.l.b16 %v110
    %v143 = vunpack.c.l.b16 %v111
    %v144 = vunpack.c.l.b16 %v112
    %v145 = vunpack.c.l.b16 %v113
    %v146 = vunpack.c.l.b16 %v114
    %v147 = vunpack.c.l.b16 %v115
    %v148 = vunpack.c.l.b16 %v116
    %v149 = vunpack.c.l.b16 %v117
    %v150 = vunpack.c.l.b16 %v118
    %v151 = vunpack.c.l.b16 %v119
    %v152 = vpack.c.b16 %v137, %v136
    %v153 = vpack.c.b16 %v139, %v138
    %v154 = vpack.c.b16 %v141, %v140
    %v155 = vpack.c.b16 %v143, %v142
    %v156 = vpack.c.b16 %v145, %v144
    %v157 = vpack.c.b16 %v147, %v146
    %v158 = vpack.c.b16 %v149, %v148
    %v159 = vpack.c.b16 %v151, %v150
    %v184 = vunpack.c.l.b16 %v72
    %v185 = vunpack.c.l.b16 %v73
    %v186 = vunpack.c.l.b16 %v74
    %v187 = vunpack.c.l.b16 %v75
    %v188 = vunpack.c.l.b16 %v76
    %v189 = vunpack.c.l.b16 %v77
    %v190 = vunpack.c.l.b16 %v78
    %v191 = vunpack.c.l.b16 %v79
    %v192 = vunpack.c.l.b16 %v80
    %v193 = vunpack.c.l.b16 %v81
    %v194 = vunpack.c.l.b16 %v82
    %v195 = vunpack.c.l.b16 %v83
    %v196 = vunpack.c.l.b16 %v84
    %v197 = vunpack.c.l.b16 %v85
    %v198 = vunpack.c.l.b16 %v86
    %v199 = vunpack.c.l.b16 %v87
    %v200 = vpack.c.b16 %v185, %v184
    %v201 = vpack.c.b16 %v187, %v186
    %v202 = vpack.c.b16 %v189, %v188
    %v203 = vpack.c.b16 %v191, %v190
    %v204 = vpack.c.b16 %v193, %v192
    %v205 = vpack.c.b16 %v195, %v194
    %v206 = vpack.c.b16 %v197, %v196
    %v207 = vpack.c.b16 %v199, %v198
    %216 = vmatpush.bf16.msra.mxu0 %v207
    %217 = vmatpush.bf16.msra.mxu0 %v206
    %218 = vmatpush.bf16.msra.mxu0 %v205
    %219 = vmatpush.bf16.msra.mxu0 %v204
    %220 = vmatpush.bf16.msra.mxu0 %v203
    %221 = vmatpush.bf16.msra.mxu0 %v202
    %222 = vmatpush.bf16.msra.mxu0 %v201
    %223 = vmatpush.bf16.msra.mxu0 %v200
    %224 = vmatmul.bf16.gmra.mxu0 %v152
    %v225 = vpop.f32.mrf.mxu0
    %v226 = vadd.f32 0.0, %v225
    %v227 = vpop.f32.mrf.mxu0
    %v228 = vadd.f32 0.0, %v227
    %229 = vmatmul.bf16.gmra.mxu0 %v153
    %v230 = vpop.f32.mrf.mxu0
    %v231 = vadd.f32 0.0, %v230
    %v232 = vpop.f32.mrf.mxu0
    %v233 = vadd.f32 0.0, %v232
    %234 = vmatmul.bf16.gmra.mxu0 %v154
    %v235 = vpop.f32.mrf.mxu0
    %v236 = vadd.f32 0.0, %v235
    %v237 = vpop.f32.mrf.mxu0
    %v238 = vadd.f32 0.0, %v237
    %239 = vmatmul.bf16.gmra.mxu0 %v155
    %v240 = vpop.f32.mrf.mxu0
    %v241 = vadd.f32 0.0, %v240
    %v242 = vpop.f32.mrf.mxu0
    %v243 = vadd.f32 0.0, %v242
    %244 = vmatmul.bf16.gmra.mxu0 %v156
    %v245 = vpop.f32.mrf.mxu0
    %v246 = vadd.f32 0.0, %v245
    %v247 = vpop.f32.mrf.mxu0
    %v248 = vadd.f32 0.0, %v247
    %249 = vmatmul.bf16.gmra.mxu0 %v157
    %v250 = vpop.f32.mrf.mxu0
    %v251 = vadd.f32 0.0, %v250
    %v252 = vpop.f32.mrf.mxu0
    %v253 = vadd.f32 0.0, %v252
    %254 = vmatmul.bf16.gmra.mxu0 %v158
    %v255 = vpop.f32.mrf.mxu0
    %v256 = vadd.f32 0.0, %v255
    %v257 = vpop.f32.mrf.mxu0
    %v258 = vadd.f32 0.0, %v257
    %259 = vmatmul.bf16.gmra.mxu0 %v159
    %v260 = vpop.f32.mrf.mxu0
    %v261 = vadd.f32 0.0, %v260
    %v262 = vpop.f32.mrf.mxu0
    %v263 = vadd.f32 0.0, %v262
    %264 = vdwg.mxu0
    %v265 = vadd.f32 %v88, %v226
    %v266 = vadd.f32 %v89, %v228
    %v267 = vadd.f32 %v90, %v231
    %v268 = vadd.f32 %v91, %v233
    %v269 = vadd.f32 %v92, %v236
    %v270 = vadd.f32 %v93, %v238
    %v271 = vadd.f32 %v94, %v241
    %v272 = vadd.f32 %v95, %v243
    %v273 = vadd.f32 %v96, %v246
    %v274 = vadd.f32 %v97, %v248
    %v275 = vadd.f32 %v98, %v251
    %v276 = vadd.f32 %v99, %v253
    %v277 = vadd.f32 %v100, %v256
    %v278 = vadd.f32 %v101, %v258
    %v279 = vadd.f32 %v102, %v261
    %v280 = vadd.f32 %v103, %v263
    %281 = vst [vmem:[#allocation2] sm:$0xff] %v265
    %282 = vst [vmem:[#allocation2 + $0x8] sm:$0xff] %v266
    %283 = vst [vmem:[#allocation2 + $0x10] sm:$0xff] %v267
    %284 = vst [vmem:[#allocation2 + $0x18] sm:$0xff] %v268
    %285 = vst [vmem:[#allocation2 + $0x20] sm:$0xff] %v269
    %286 = vst [vmem:[#allocation2 + $0x28] sm:$0xff] %v270
    %287 = vst [vmem:[#allocation2 + $0x30] sm:$0xff] %v271
    %288 = vst [vmem:[#allocation2 + $0x38] sm:$0xff] %v272
    %289 = vst [vmem:[#allocation2 + $0x40] sm:$0xff] %v273
    %290 = vst [vmem:[#allocation2 + $0x48] sm:$0xff] %v274
    %291 = vst [vmem:[#allocation2 + $0x50] sm:$0xff] %v275
    %292 = vst [vmem:[#allocation2 + $0x58] sm:$0xff] %v276
    %293 = vst [vmem:[#allocation2 + $0x60] sm:$0xff] %v277
    %294 = vst [vmem:[#allocation2 + $0x68] sm:$0xff] %v278
    %295 = vst [vmem:[#allocation2 + $0x70] sm:$0xff] %v279
    %296 = vst [vmem:[#allocation2 + $0x78] sm:$0xff] %v280
  $region21: #{gnn_city_predictor.7} parent=0 // pred_fallthru
    _
  // Predicated region
  $region22: #{gnn_city_predictor.7} parent=0 // pred_check
    %p297 = pneg %p40
  $region23: #{gnn_city_predictor.7} parent=0 // pred_check_branch
    %299 = sbr.rel (%p297) target = $region25
  $region24: #{gnn_city_predictor.7} parent=0 // pred_region
    %v300 = vld [vmem:[#allocation2] sm:$0xff]
    %v301 = vld [vmem:[#allocation2 + $0x8] sm:$0xff]
    %v302 = vld [vmem:[#allocation2 + $0x10] sm:$0xff]
    %v303 = vld [vmem:[#allocation2 + $0x18] sm:$0xff]
    %v304 = vld [vmem:[#allocation2 + $0x20] sm:$0xff]
    %v305 = vld [vmem:[#allocation2 + $0x28] sm:$0xff]
    %v306 = vld [vmem:[#allocation2 + $0x30] sm:$0xff]
    %v307 = vld [vmem:[#allocation2 + $0x38] sm:$0xff]
    %v308 = vld [vmem:[#allocation2 + $0x40] sm:$0xff]
    %v309 = vld [vmem:[#allocation2 + $0x48] sm:$0xff]
    %v310 = vld [vmem:[#allocation2 + $0x50] sm:$0xff]
    %v311 = vld [vmem:[#allocation2 + $0x58] sm:$0xff]
    %v312 = vld [vmem:[#allocation2 + $0x60] sm:$0xff]
    %v313 = vld [vmem:[#allocation2 + $0x68] sm:$0xff]
    %v314 = vld [vmem:[#allocation2 + $0x70] sm:$0xff]
    %v315 = vld [vmem:[#allocation2 + $0x78] sm:$0xff]
    %v316 = vld [vmem:[%s4] sm:$0x1]
    %v318 = vperm.slane %v316, 0
    %v320 = vadd.f32 %v300, %v318
    %v321 = vadd.f32 %v301, %v318
    %v322 = vadd.f32 %v302, %v318
    %v323 = vadd.f32 %v303, %v318
    %v324 = vadd.f32 %v304, %v318
    %v325 = vadd.f32 %v305, %v318
    %v326 = vadd.f32 %v306, %v318
    %v327 = vadd.f32 %v307, %v318
    %v328 = vadd.f32 %v308, %v318
    %v329 = vadd.f32 %v309, %v318
    %v330 = vadd.f32 %v310, %v318
    %v331 = vadd.f32 %v311, %v318
    %v332 = vadd.f32 %v312, %v318
    %v333 = vadd.f32 %v313, %v318
    %v334 = vadd.f32 %v314, %v318
    %v335 = vadd.f32 %v315, %v318
    %336 = vst [vmem:[%s5] sm:$0xff] %v320
    %337 = vst [vmem:[%s5 + $0x8] sm:$0xff] %v321
    %338 = vst [vmem:[%s5 + $0x10] sm:$0xff] %v322
    %339 = vst [vmem:[%s5 + $0x18] sm:$0xff] %v323
    %340 = vst [vmem:[%s5 + $0x20] sm:$0xff] %v324
    %341 = vst [vmem:[%s5 + $0x28] sm:$0xff] %v325
    %342 = vst [vmem:[%s5 + $0x30] sm:$0xff] %v326
    %343 = vst [vmem:[%s5 + $0x38] sm:$0xff] %v327
    %344 = vst [vmem:[%s5 + $0x40] sm:$0xff] %v328
    %345 = vst [vmem:[%s5 + $0x48] sm:$0xff] %v329
    %346 = vst [vmem:[%s5 + $0x50] sm:$0xff] %v330
    %347 = vst [vmem:[%s5 + $0x58] sm:$0xff] %v331
    %348 = vst [vmem:[%s5 + $0x60] sm:$0xff] %v332
    %349 = vst [vmem:[%s5 + $0x68] sm:$0xff] %v333
    %350 = vst [vmem:[%s5 + $0x70] sm:$0xff] %v334
    %351 = vst [vmem:[%s5 + $0x78] sm:$0xff] %v335
  $region25: #{gnn_city_predictor.7} parent=0 // pred_fallthru
    _
  // Predicated region
  $region26: #{gnn_city_predictor.7} parent=0 // pred_check
    _
  $region27: #{gnn_city_predictor.7} parent=0 // pred_check_branch
    %353 = sbr.rel (0) target = $region29
  $region28: #{gnn_city_predictor.7} parent=0 // pred_region
    _
  $region29: #{gnn_city_predictor.7} parent=0 // pred_fallthru
    _
  // Predicated region
  $region30: #{gnn_city_predictor.7} parent=0 // pred_check
    _
  $region31: #{gnn_city_predictor.7} parent=0 // pred_check_branch
    %355 = sbr.rel (0) target = $region33
  $region32: #{gnn_city_predictor.7} parent=0 // pred_region
    _
  $region33: #{gnn_city_predictor.7} parent=0 // pred_fallthru
    _

// kernel: gnn_city_predictor.5
$region0: #{gnn_city_predictor.5}
  #allocation0 [shape = 'u32[]', space=smem, size = 0x4, offset = 0x4, fixed_abs, tag = 'smem constant byte address 0x4 - core index']
  #allocation1 [shape = 'u32[72,128]{1,0:T(1,128)}', space=vmem, size = 0x9000, scoped, tag = 'internal scratch']
  #allocation2 [shape = 'f32[128,128]{1,0:T(8,128)}', space=vmem, size = 0x10000, scoped, tag = 'scratch operand']
  #allocation3 [shape = 's32[1]{0}', space=sflag, size = 0x4, scoped, tag = 'scoped memory for gnn_city_predictor.5']
  #allocation4 [shape = 's32[1]{0:T(128)S(6)}', space=smem, size = 0x200, scoped, tag = 'prefetched SMEM operand 0']
  #allocation5 [shape = 's32[1]{0:T(128)S(6)}', space=smem, size = 0x200, scoped, tag = 'prefetched SMEM operand 1']
  %s0 = inlined_call_operand.<no memory space> [shape: s32[1], index: 0, kind: input, shape index: {}]
  %s1 = inlined_call_operand.<no memory space> [shape: s32[1], index: 1, kind: input, shape index: {}]
  %s2 = inlined_call_operand.vmem [shape: bf16[128,128], index: 2, kind: input, shape index: {}]
  %s3 = inlined_call_operand.vmem [shape: bf16[128,128], index: 3, kind: input, shape index: {}]
  %s4 = inlined_call_operand.vmem [shape: f32[1,128], index: 4, kind: input, shape index: {}]
  %s5 = inlined_call_operand.vmem [shape: bf16[128,128], index: 5, kind: output, shape index: {}]
  %s6 = sld [smem:[#allocation0]]
  $region34: #{gnn_city_predictor.5} parent=0
    _
  %s8 = ssub.s32 1, %s6
  %s9 = scalar_select 0, %s8, %s6
  %10 = sst [smem:[#allocation4]] %s0
  %11 = sst [smem:[#allocation5]] %s1
  // Predicated region
  $region2: #{gnn_city_predictor.5} parent=0 // pred_check
    _
  $region3: #{gnn_city_predictor.5} parent=0 // pred_check_branch
    %13 = sbr.rel (0) target = $region5
  $region4: #{gnn_city_predictor.5} parent=0 // pred_region
    %s14 = sadd.s32 0, 0
    %s15 = sld [smem:[#allocation5 + %s14]]
    %p16 = scmp.lt.s32.totalorder %s15, 0
    %s17 = scalar_select %p16, %s15, 0
    %s18 = smul.addr %s17, 4
    %s19 = scalar_lea.vmem %s2, %s18
    %s20 = sadd.s32 0, 0
    %s21 = sld [smem:[#allocation5 + %s20]]
  $region5: #{gnn_city_predictor.5} parent=0 // pred_fallthru
    _
  // Predicated region
  $region6: #{gnn_city_predictor.5} parent=0 // pred_check
    _
  $region7: #{gnn_city_predictor.5} parent=0 // pred_check_branch
    %23 = sbr.rel (0) target = $region9
  $region8: #{gnn_city_predictor.5} parent=0 // pred_region
    _
  $region9: #{gnn_city_predictor.5} parent=0 // pred_fallthru
    _
  // Predicated region
  $region10: #{gnn_city_predictor.5} parent=0 // pred_check
    _
  $region11: #{gnn_city_predictor.5} parent=0 // pred_check_branch
    %25 = sbr.rel (0) target = $region13
  $region12: #{gnn_city_predictor.5} parent=0 // pred_region
    _
  $region13: #{gnn_city_predictor.5} parent=0 // pred_fallthru
    _
  %s26 = sadd.s32 0, 0
  %s27 = sld [smem:[#allocation5 + %s26]]
  %p28 = scmp.lt.s32.totalorder %s27, 0
  %s29 = scalar_select %p28, %s27, 0
  %s30 = smul.addr %s29, 4
  %s31 = scalar_lea.vmem %s2, %s30
  %s32 = sadd.s32 0, 0
  %s33 = sld [smem:[#allocation5 + %s32]]
  %p34 = scmp.lt.s32.totalorder %s33, 0
  %s35 = scalar_select %p34, %s33, 0
  %s36 = smul.addr %s35, 4
  %s37 = scalar_lea.vmem %s2, %s36
  %s38 = sadd.s32 0, 0
  %s39 = sld [smem:[#allocation5 + %s38]]
  %p40 = scmp.eq.s32.totalorder 0, 0
  // Predicated region
  $region14: #{gnn_city_predictor.5} parent=0 // pred_check
    %p41 = pneg %p40
  $region15: #{gnn_city_predictor.5} parent=0 // pred_check_branch
    %43 = sbr.rel (%p41) target = $region17
  $region16: #{gnn_city_predictor.5} parent=0 // pred_region
    %44 = vst [vmem:[#allocation2] sm:$0xff] 0.0
    %45 = vst [vmem:[#allocation2 + $0x8] sm:$0xff] 0.0
    %46 = vst [vmem:[#allocation2 + $0x10] sm:$0xff] 0.0
    %47 = vst [vmem:[#allocation2 + $0x18] sm:$0xff] 0.0
    %48 = vst [vmem:[#allocation2 + $0x20] sm:$0xff] 0.0
    %49 = vst [vmem:[#allocation2 + $0x28] sm:$0xff] 0.0
    %50 = vst [vmem:[#allocation2 + $0x30] sm:$0xff] 0.0
    %51 = vst [vmem:[#allocation2 + $0x38] sm:$0xff] 0.0
    %52 = vst [vmem:[#allocation2 + $0x40] sm:$0xff] 0.0
    %53 = vst [vmem:[#allocation2 + $0x48] sm:$0xff] 0.0
    %54 = vst [vmem:[#allocation2 + $0x50] sm:$0xff] 0.0
    %55 = vst [vmem:[#allocation2 + $0x58] sm:$0xff] 0.0
    %56 = vst [vmem:[#allocation2 + $0x60] sm:$0xff] 0.0
    %57 = vst [vmem:[#allocation2 + $0x68] sm:$0xff] 0.0
    %58 = vst [vmem:[#allocation2 + $0x70] sm:$0xff] 0.0
    %59 = vst [vmem:[#allocation2 + $0x78] sm:$0xff] 0.0
  $region17: #{gnn_city_predictor.5} parent=0 // pred_fallthru
    _
  %s60 = sld [smem:[#allocation4]]
  %p61 = scmp.lt.s32.totalorder 0, %s60
  // Predicated region
  $region18: #{gnn_city_predictor.5} parent=0 // pred_check
    %p62 = pneg %p61
  $region19: #{gnn_city_predictor.5} parent=0 // pred_check_branch
    %64 = sbr.rel (%p62) target = $region21
  $region20: #{gnn_city_predictor.5} parent=0 // pred_region
    %s65 = sadd.s32 0, 0
    %s66 = sld [smem:[#allocation5 + %s65]]
    %s67 = smul.u32 %s66, 128
    %s68 = sshra.s32 %s67, 3
    %s69 = sand.u32 %s67, 7
    %s70 = smul.addr %s68, 4
    %s71 = scalar_lea.vmem %s3, %s70
    %v72 = vld [vmem:[%s71] sm:$0xf]
    %v73 = vld [vmem:[%s71 + $0x4] sm:$0xf]
    %v74 = vld [vmem:[%s71 + $0x8] sm:$0xf]
    %v75 = vld [vmem:[%s71 + $0xc] sm:$0xf]
    %v76 = vld [vmem:[%s71 + $0x10] sm:$0xf]
    %v77 = vld [vmem:[%s71 + $0x14] sm:$0xf]
    %v78 = vld [vmem:[%s71 + $0x18] sm:$0xf]
    %v79 = vld [vmem:[%s71 + $0x1c] sm:$0xf]
    %v80 = vld [vmem:[%s71 + $0x20] sm:$0xf]
    %v81 = vld [vmem:[%s71 + $0x24] sm:$0xf]
    %v82 = vld [vmem:[%s71 + $0x28] sm:$0xf]
    %v83 = vld [vmem:[%s71 + $0x2c] sm:$0xf]
    %v84 = vld [vmem:[%s71 + $0x30] sm:$0xf]
    %v85 = vld [vmem:[%s71 + $0x34] sm:$0xf]
    %v86 = vld [vmem:[%s71 + $0x38] sm:$0xf]
    %v87 = vld [vmem:[%s71 + $0x3c] sm:$0xf]
    %v88 = vld [vmem:[#allocation2] sm:$0xff]
    %v89 = vld [vmem:[#allocation2 + $0x8] sm:$0xff]
    %v90 = vld [vmem:[#allocation2 + $0x10] sm:$0xff]
    %v91 = vld [vmem:[#allocation2 + $0x18] sm:$0xff]
    %v92 = vld [vmem:[#allocation2 + $0x20] sm:$0xff]
    %v93 = vld [vmem:[#allocation2 + $0x28] sm:$0xff]
    %v94 = vld [vmem:[#allocation2 + $0x30] sm:$0xff]
    %v95 = vld [vmem:[#allocation2 + $0x38] sm:$0xff]
    %v96 = vld [vmem:[#allocation2 + $0x40] sm:$0xff]
    %v97 = vld [vmem:[#allocation2 + $0x48] sm:$0xff]
    %v98 = vld [vmem:[#allocation2 + $0x50] sm:$0xff]
    %v99 = vld [vmem:[#allocation2 + $0x58] sm:$0xff]
    %v100 = vld [vmem:[#allocation2 + $0x60] sm:$0xff]
    %v101 = vld [vmem:[#allocation2 + $0x68] sm:$0xff]
    %v102 = vld [vmem:[#allocation2 + $0x70] sm:$0xff]
    %v103 = vld [vmem:[#allocation2 + $0x78] sm:$0xff]
    %v104 = vld [vmem:[%s37] sm:$0xf]
    %v105 = vld [vmem:[%s37 + $0x4] sm:$0xf]
    %v106 = vld [vmem:[%s37 + $0x8] sm:$0xf]
    %v107 = vld [vmem:[%s37 + $0xc] sm:$0xf]
    %v108 = vld [vmem:[%s37 + $0x10] sm:$0xf]
    %v109 = vld [vmem:[%s37 + $0x14] sm:$0xf]
    %v110 = vld [vmem:[%s37 + $0x18] sm:$0xf]
    %v111 = vld [vmem:[%s37 + $0x1c] sm:$0xf]
    %v112 = vld [vmem:[%s37 + $0x20] sm:$0xf]
    %v113 = vld [vmem:[%s37 + $0x24] sm:$0xf]
    %v114 = vld [vmem:[%s37 + $0x28] sm:$0xf]
    %v115 = vld [vmem:[%s37 + $0x2c] sm:$0xf]
    %v116 = vld [vmem:[%s37 + $0x30] sm:$0xf]
    %v117 = vld [vmem:[%s37 + $0x34] sm:$0xf]
    %v118 = vld [vmem:[%s37 + $0x38] sm:$0xf]
    %v119 = vld [vmem:[%s37 + $0x3c] sm:$0xf]
    %v136 = vunpack.c.l.b16 %v104
    %v137 = vunpack.c.l.b16 %v105
    %v138 = vunpack.c.l.b16 %v106
    %v139 = vunpack.c.l.b16 %v107
    %v140 = vunpack.c.l.b16 %v108
    %v141 = vunpack.c.l.b16 %v109
    %v142 = vunpack.c.l.b16 %v110
    %v143 = vunpack.c.l.b16 %v111
    %v144 = vunpack.c.l.b16 %v112
    %v145 = vunpack.c.l.b16 %v113
    %v146 = vunpack.c.l.b16 %v114
    %v147 = vunpack.c.l.b16 %v115
    %v148 = vunpack.c.l.b16 %v116
    %v149 = vunpack.c.l.b16 %v117
    %v150 = vunpack.c.l.b16 %v118
    %v151 = vunpack.c.l.b16 %v119
    %v152 = vpack.c.b16 %v137, %v136
    %v153 = vpack.c.b16 %v139, %v138
    %v154 = vpack.c.b16 %v141, %v140
    %v155 = vpack.c.b16 %v143, %v142
    %v156 = vpack.c.b16 %v145, %v144
    %v157 = vpack.c.b16 %v147, %v146
    %v158 = vpack.c.b16 %v149, %v148
    %v159 = vpack.c.b16 %v151, %v150
    %v184 = vunpack.c.l.b16 %v72
    %v185 = vunpack.c.l.b16 %v73
    %v186 = vunpack.c.l.b16 %v74
    %v187 = vunpack.c.l.b16 %v75
    %v188 = vunpack.c.l.b16 %v76
    %v189 = vunpack.c.l.b16 %v77
    %v190 = vunpack.c.l.b16 %v78
    %v191 = vunpack.c.l.b16 %v79
    %v192 = vunpack.c.l.b16 %v80
    %v193 = vunpack.c.l.b16 %v81
    %v194 = vunpack.c.l.b16 %v82
    %v195 = vunpack.c.l.b16 %v83
    %v196 = vunpack.c.l.b16 %v84
    %v197 = vunpack.c.l.b16 %v85
    %v198 = vunpack.c.l.b16 %v86
    %v199 = vunpack.c.l.b16 %v87
    %v200 = vpack.c.b16 %v185, %v184
    %v201 = vpack.c.b16 %v187, %v186
    %v202 = vpack.c.b16 %v189, %v188
    %v203 = vpack.c.b16 %v191, %v190
    %v204 = vpack.c.b16 %v193, %v192
    %v205 = vpack.c.b16 %v195, %v194
    %v206 = vpack.c.b16 %v197, %v196
    %v207 = vpack.c.b16 %v199, %v198
    %216 = vmatpush.bf16.msra.mxu0 %v207
    %217 = vmatpush.bf16.msra.mxu0 %v206
    %218 = vmatpush.bf16.msra.mxu0 %v205
    %219 = vmatpush.bf16.msra.mxu0 %v204
    %220 = vmatpush.bf16.msra.mxu0 %v203
    %221 = vmatpush.bf16.msra.mxu0 %v202
    %222 = vmatpush.bf16.msra.mxu0 %v201
    %223 = vmatpush.bf16.msra.mxu0 %v200
    %224 = vmatmul.bf16.gmra.mxu0 %v152
    %v225 = vpop.f32.mrf.mxu0
    %v226 = vadd.f32 0.0, %v225
    %v227 = vpop.f32.mrf.mxu0
    %v228 = vadd.f32 0.0, %v227
    %229 = vmatmul.bf16.gmra.mxu0 %v153
    %v230 = vpop.f32.mrf.mxu0
    %v231 = vadd.f32 0.0, %v230
    %v232 = vpop.f32.mrf.mxu0
    %v233 = vadd.f32 0.0, %v232
    %234 = vmatmul.bf16.gmra.mxu0 %v154
    %v235 = vpop.f32.mrf.mxu0
    %v236 = vadd.f32 0.0, %v235
    %v237 = vpop.f32.mrf.mxu0
    %v238 = vadd.f32 0.0, %v237
    %239 = vmatmul.bf16.gmra.mxu0 %v155
    %v240 = vpop.f32.mrf.mxu0
    %v241 = vadd.f32 0.0, %v240
    %v242 = vpop.f32.mrf.mxu0
    %v243 = vadd.f32 0.0, %v242
    %244 = vmatmul.bf16.gmra.mxu0 %v156
    %v245 = vpop.f32.mrf.mxu0
    %v246 = vadd.f32 0.0, %v245
    %v247 = vpop.f32.mrf.mxu0
    %v248 = vadd.f32 0.0, %v247
    %249 = vmatmul.bf16.gmra.mxu0 %v157
    %v250 = vpop.f32.mrf.mxu0
    %v251 = vadd.f32 0.0, %v250
    %v252 = vpop.f32.mrf.mxu0
    %v253 = vadd.f32 0.0, %v252
    %254 = vmatmul.bf16.gmra.mxu0 %v158
    %v255 = vpop.f32.mrf.mxu0
    %v256 = vadd.f32 0.0, %v255
    %v257 = vpop.f32.mrf.mxu0
    %v258 = vadd.f32 0.0, %v257
    %259 = vmatmul.bf16.gmra.mxu0 %v159
    %v260 = vpop.f32.mrf.mxu0
    %v261 = vadd.f32 0.0, %v260
    %v262 = vpop.f32.mrf.mxu0
    %v263 = vadd.f32 0.0, %v262
    %264 = vdwg.mxu0
    %v265 = vadd.f32 %v88, %v226
    %v266 = vadd.f32 %v89, %v228
    %v267 = vadd.f32 %v90, %v231
    %v268 = vadd.f32 %v91, %v233
    %v269 = vadd.f32 %v92, %v236
    %v270 = vadd.f32 %v93, %v238
    %v271 = vadd.f32 %v94, %v241
    %v272 = vadd.f32 %v95, %v243
    %v273 = vadd.f32 %v96, %v246
    %v274 = vadd.f32 %v97, %v248
    %v275 = vadd.f32 %v98, %v251
    %v276 = vadd.f32 %v99, %v253
    %v277 = vadd.f32 %v100, %v256
    %v278 = vadd.f32 %v101, %v258
    %v279 = vadd.f32 %v102, %v261
    %v280 = vadd.f32 %v103, %v263
    %281 = vst [vmem:[#allocation2] sm:$0xff] %v265
    %282 = vst [vmem:[#allocation2 + $0x8] sm:$0xff] %v266
    %283 = vst [vmem:[#allocation2 + $0x10] sm:$0xff] %v267
    %284 = vst [vmem:[#allocation2 + $0x18] sm:$0xff] %v268
    %285 = vst [vmem:[#allocation2 + $0x20] sm:$0xff] %v269
    %286 = vst [vmem:[#allocation2 + $0x28] sm:$0xff] %v270
    %287 = vst [vmem:[#allocation2 + $0x30] sm:$0xff] %v271
    %288 = vst [vmem:[#allocation2 + $0x38] sm:$0xff] %v272
    %289 = vst [vmem:[#allocation2 + $0x40] sm:$0xff] %v273
    %290 = vst [vmem:[#allocation2 + $0x48] sm:$0xff] %v274
    %291 = vst [vmem:[#allocation2 + $0x50] sm:$0xff] %v275
    %292 = vst [vmem:[#allocation2 + $0x58] sm:$0xff] %v276
    %293 = vst [vmem:[#allocation2 + $0x60] sm:$0xff] %v277
    %294 = vst [vmem:[#allocation2 + $0x68] sm:$0xff] %v278
    %295 = vst [vmem:[#allocation2 + $0x70] sm:$0xff] %v279
    %296 = vst [vmem:[#allocation2 + $0x78] sm:$0xff] %v280
  $region21: #{gnn_city_predictor.5} parent=0 // pred_fallthru
    _
  // Predicated region
  $region22: #{gnn_city_predictor.5} parent=0 // pred_check
    %p297 = pneg %p40
  $region23: #{gnn_city_predictor.5} parent=0 // pred_check_branch
    %299 = sbr.rel (%p297) target = $region25
  $region24: #{gnn_city_predictor.5} parent=0 // pred_region
    %v300 = vld [vmem:[#allocation2] sm:$0xff]
    %v301 = vld [vmem:[#allocation2 + $0x8] sm:$0xff]
    %v302 = vld [vmem:[#allocation2 + $0x10] sm:$0xff]
    %v303 = vld [vmem:[#allocation2 + $0x18] sm:$0xff]
    %v304 = vld [vmem:[#allocation2 + $0x20] sm:$0xff]
    %v305 = vld [vmem:[#allocation2 + $0x28] sm:$0xff]
    %v306 = vld [vmem:[#allocation2 + $0x30] sm:$0xff]
    %v307 = vld [vmem:[#allocation2 + $0x38] sm:$0xff]
    %v308 = vld [vmem:[#allocation2 + $0x40] sm:$0xff]
    %v309 = vld [vmem:[#allocation2 + $0x48] sm:$0xff]
    %v310 = vld [vmem:[#allocation2 + $0x50] sm:$0xff]
    %v311 = vld [vmem:[#allocation2 + $0x58] sm:$0xff]
    %v312 = vld [vmem:[#allocation2 + $0x60] sm:$0xff]
    %v313 = vld [vmem:[#allocation2 + $0x68] sm:$0xff]
    %v314 = vld [vmem:[#allocation2 + $0x70] sm:$0xff]
    %v315 = vld [vmem:[#allocation2 + $0x78] sm:$0xff]
    %v316 = vld [vmem:[%s4] sm:$0x1]
    %v318 = vperm.slane %v316, 0
    %v320 = vadd.f32 %v300, %v318
    %v321 = vadd.f32 %v301, %v318
    %v322 = vadd.f32 %v302, %v318
    %v323 = vadd.f32 %v303, %v318
    %v324 = vadd.f32 %v304, %v318
    %v325 = vadd.f32 %v305, %v318
    %v326 = vadd.f32 %v306, %v318
    %v327 = vadd.f32 %v307, %v318
    %v328 = vadd.f32 %v308, %v318
    %v329 = vadd.f32 %v309, %v318
    %v330 = vadd.f32 %v310, %v318
    %v331 = vadd.f32 %v311, %v318
    %v332 = vadd.f32 %v312, %v318
    %v333 = vadd.f32 %v313, %v318
    %v334 = vadd.f32 %v314, %v318
    %v335 = vadd.f32 %v315, %v318
    %v336 = vmax.f32 %v320, 0.0
    %v337 = vmax.f32 %v321, 0.0
    %v338 = vmax.f32 %v322, 0.0
    %v339 = vmax.f32 %v323, 0.0
    %v340 = vmax.f32 %v324, 0.0
    %v341 = vmax.f32 %v325, 0.0
    %v342 = vmax.f32 %v326, 0.0
    %v343 = vmax.f32 %v327, 0.0
    %v344 = vmax.f32 %v328, 0.0
    %v345 = vmax.f32 %v329, 0.0
    %v346 = vmax.f32 %v330, 0.0
    %v347 = vmax.f32 %v331, 0.0
    %v348 = vmax.f32 %v332, 0.0
    %v349 = vmax.f32 %v333, 0.0
    %v350 = vmax.f32 %v334, 0.0
    %v351 = vmax.f32 %v335, 0.0
    %v352 = vpack.c.bf16 %v336, %v336
    %v353 = vpack.c.bf16 %v337, %v337
    %v354 = vpack.c.bf16 %v338, %v338
    %v355 = vpack.c.bf16 %v339, %v339
    %v356 = vpack.c.bf16 %v340, %v340
    %v357 = vpack.c.bf16 %v341, %v341
    %v358 = vpack.c.bf16 %v342, %v342
    %v359 = vpack.c.bf16 %v343, %v343
    %v360 = vpack.c.bf16 %v344, %v344
    %v361 = vpack.c.bf16 %v345, %v345
    %v362 = vpack.c.bf16 %v346, %v346
    %v363 = vpack.c.bf16 %v347, %v347
    %v364 = vpack.c.bf16 %v348, %v348
    %v365 = vpack.c.bf16 %v349, %v349
    %v366 = vpack.c.bf16 %v350, %v350
    %v367 = vpack.c.bf16 %v351, %v351
    %368 = vst [vmem:[%s5] sm:$0xf] %v352
    %369 = vst [vmem:[%s5 + $0x4] sm:$0xf] %v353
    %370 = vst [vmem:[%s5 + $0x8] sm:$0xf] %v354
    %371 = vst [vmem:[%s5 + $0xc] sm:$0xf] %v355
    %372 = vst [vmem:[%s5 + $0x10] sm:$0xf] %v356
    %373 = vst [vmem:[%s5 + $0x14] sm:$0xf] %v357
    %374 = vst [vmem:[%s5 + $0x18] sm:$0xf] %v358
    %375 = vst [vmem:[%s5 + $0x1c] sm:$0xf] %v359
    %376 = vst [vmem:[%s5 + $0x20] sm:$0xf] %v360
    %377 = vst [vmem:[%s5 + $0x24] sm:$0xf] %v361
    %378 = vst [vmem:[%s5 + $0x28] sm:$0xf] %v362
    %379 = vst [vmem:[%s5 + $0x2c] sm:$0xf] %v363
    %380 = vst [vmem:[%s5 + $0x30] sm:$0xf] %v364
    %381 = vst [vmem:[%s5 + $0x34] sm:$0xf] %v365
    %382 = vst [vmem:[%s5 + $0x38] sm:$0xf] %v366
    %383 = vst [vmem:[%s5 + $0x3c] sm:$0xf] %v367
  $region25: #{gnn_city_predictor.5} parent=0 // pred_fallthru
    _
  // Predicated region
  $region26: #{gnn_city_predictor.5} parent=0 // pred_check
    _
  $region27: #{gnn_city_predictor.5} parent=0 // pred_check_branch
    %385 = sbr.rel (0) target = $region29
  $region28: #{gnn_city_predictor.5} parent=0 // pred_region
    _
  $region29: #{gnn_city_predictor.5} parent=0 // pred_fallthru
    _
  // Predicated region
  $region30: #{gnn_city_predictor.5} parent=0 // pred_check
    _
  $region31: #{gnn_city_predictor.5} parent=0 // pred_check_branch
    %387 = sbr.rel (0) target = $region33
  $region32: #{gnn_city_predictor.5} parent=0 // pred_region
    _
  $region33: #{gnn_city_predictor.5} parent=0 // pred_fallthru
    _

// kernel: gnn_city_predictor.4
$region0: #{gnn_city_predictor.4}
  #allocation0 [shape = 'u32[]', space=smem, size = 0x4, offset = 0x4, fixed_abs, tag = 'smem constant byte address 0x4 - core index']
  #allocation1 [shape = 'u32[72,128]{1,0:T(1,128)}', space=vmem, size = 0x9000, scoped, tag = 'internal scratch']
  %s0 = inlined_call_operand.vmem [shape: bf16[128,128], index: 0, kind: input, shape index: {}]
  %s1 = inlined_call_operand.vmem [shape: bf16[128,128], index: 1, kind: input, shape index: {}]
  %s2 = inlined_call_operand.vmem [shape: bf16[128,128], index: 2, kind: output, shape index: {}]
  %s3 = sld [smem:[#allocation0]]
  $region18: #{gnn_city_predictor.4} parent=0
    _
  %s5 = ssub.s32 1, %s3
  %s6 = scalar_select 0, %s5, %s3
  // Predicated region
  $region2: #{gnn_city_predictor.4} parent=0 // pred_check
    _
  $region3: #{gnn_city_predictor.4} parent=0 // pred_check_branch
    %8 = sbr.rel (0) target = $region5
  $region4: #{gnn_city_predictor.4} parent=0 // pred_region
    _
  $region5: #{gnn_city_predictor.4} parent=0 // pred_fallthru
    _
  // Predicated region
  $region6: #{gnn_city_predictor.4} parent=0 // pred_check
    _
  $region7: #{gnn_city_predictor.4} parent=0 // pred_check_branch
    %10 = sbr.rel (0) target = $region9
  $region8: #{gnn_city_predictor.4} parent=0 // pred_region
    _
  $region9: #{gnn_city_predictor.4} parent=0 // pred_fallthru
    _
  %v11 = vld [vmem:[%s0] sm:$0xf]
  %v12 = vld [vmem:[%s0 + $0x4] sm:$0xf]
  %v13 = vld [vmem:[%s0 + $0x8] sm:$0xf]
  %v14 = vld [vmem:[%s0 + $0xc] sm:$0xf]
  %v15 = vld [vmem:[%s0 + $0x10] sm:$0xf]
  %v16 = vld [vmem:[%s0 + $0x14] sm:$0xf]
  %v17 = vld [vmem:[%s0 + $0x18] sm:$0xf]
  %v18 = vld [vmem:[%s0 + $0x1c] sm:$0xf]
  %v19 = vld [vmem:[%s0 + $0x20] sm:$0xf]
  %v20 = vld [vmem:[%s0 + $0x24] sm:$0xf]
  %v21 = vld [vmem:[%s0 + $0x28] sm:$0xf]
  %v22 = vld [vmem:[%s0 + $0x2c] sm:$0xf]
  %v23 = vld [vmem:[%s0 + $0x30] sm:$0xf]
  %v24 = vld [vmem:[%s0 + $0x34] sm:$0xf]
  %v25 = vld [vmem:[%s0 + $0x38] sm:$0xf]
  %v26 = vld [vmem:[%s0 + $0x3c] sm:$0xf]
  %v27 = vld [vmem:[%s1] sm:$0xf]
  %v28 = vld [vmem:[%s1 + $0x4] sm:$0xf]
  %v29 = vld [vmem:[%s1 + $0x8] sm:$0xf]
  %v30 = vld [vmem:[%s1 + $0xc] sm:$0xf]
  %v31 = vld [vmem:[%s1 + $0x10] sm:$0xf]
  %v32 = vld [vmem:[%s1 + $0x14] sm:$0xf]
  %v33 = vld [vmem:[%s1 + $0x18] sm:$0xf]
  %v34 = vld [vmem:[%s1 + $0x1c] sm:$0xf]
  %v35 = vld [vmem:[%s1 + $0x20] sm:$0xf]
  %v36 = vld [vmem:[%s1 + $0x24] sm:$0xf]
  %v37 = vld [vmem:[%s1 + $0x28] sm:$0xf]
  %v38 = vld [vmem:[%s1 + $0x2c] sm:$0xf]
  %v39 = vld [vmem:[%s1 + $0x30] sm:$0xf]
  %v40 = vld [vmem:[%s1 + $0x34] sm:$0xf]
  %v41 = vld [vmem:[%s1 + $0x38] sm:$0xf]
  %v42 = vld [vmem:[%s1 + $0x3c] sm:$0xf]
  %v59 = vunpack.c.l.b16 %v11
  %v60 = vunpack.c.l.b16 %v12
  %v61 = vunpack.c.l.b16 %v13
  %v62 = vunpack.c.l.b16 %v14
  %v63 = vunpack.c.l.b16 %v15
  %v64 = vunpack.c.l.b16 %v16
  %v65 = vunpack.c.l.b16 %v17
  %v66 = vunpack.c.l.b16 %v18
  %v67 = vunpack.c.l.b16 %v19
  %v68 = vunpack.c.l.b16 %v20
  %v69 = vunpack.c.l.b16 %v21
  %v70 = vunpack.c.l.b16 %v22
  %v71 = vunpack.c.l.b16 %v23
  %v72 = vunpack.c.l.b16 %v24
  %v73 = vunpack.c.l.b16 %v25
  %v74 = vunpack.c.l.b16 %v26
  %v75 = vpack.c.b16 %v60, %v59
  %v76 = vpack.c.b16 %v62, %v61
  %v77 = vpack.c.b16 %v64, %v63
  %v78 = vpack.c.b16 %v66, %v65
  %v79 = vpack.c.b16 %v68, %v67
  %v80 = vpack.c.b16 %v70, %v69
  %v81 = vpack.c.b16 %v72, %v71
  %v82 = vpack.c.b16 %v74, %v73
  %v107 = vunpack.c.l.b16 %v27
  %v108 = vunpack.c.l.b16 %v28
  %v109 = vunpack.c.l.b16 %v29
  %v110 = vunpack.c.l.b16 %v30
  %v111 = vunpack.c.l.b16 %v31
  %v112 = vunpack.c.l.b16 %v32
  %v113 = vunpack.c.l.b16 %v33
  %v114 = vunpack.c.l.b16 %v34
  %v115 = vunpack.c.l.b16 %v35
  %v116 = vunpack.c.l.b16 %v36
  %v117 = vunpack.c.l.b16 %v37
  %v118 = vunpack.c.l.b16 %v38
  %v119 = vunpack.c.l.b16 %v39
  %v120 = vunpack.c.l.b16 %v40
  %v121 = vunpack.c.l.b16 %v41
  %v122 = vunpack.c.l.b16 %v42
  %v123 = vpack.c.b16 %v108, %v107
  %v124 = vpack.c.b16 %v110, %v109
  %v125 = vpack.c.b16 %v112, %v111
  %v126 = vpack.c.b16 %v114, %v113
  %v127 = vpack.c.b16 %v116, %v115
  %v128 = vpack.c.b16 %v118, %v117
  %v129 = vpack.c.b16 %v120, %v119
  %v130 = vpack.c.b16 %v122, %v121
  %139 = vmatpush.bf16.msra.mxu0 %v130
  %140 = vmatpush.bf16.msra.mxu0 %v129
  %141 = vmatpush.bf16.msra.mxu0 %v128
  %142 = vmatpush.bf16.msra.mxu0 %v127
  %143 = vmatpush.bf16.msra.mxu0 %v126
  %144 = vmatpush.bf16.msra.mxu0 %v125
  %145 = vmatpush.bf16.msra.mxu0 %v124
  %146 = vmatpush.bf16.msra.mxu0 %v123
  %147 = vmatmul.bf16.gmra.mxu0 %v75
  %v148 = vpop.f32.mrf.mxu0
  %v149 = vadd.f32 0.0, %v148
  %v150 = vpop.f32.mrf.mxu0
  %v151 = vadd.f32 0.0, %v150
  %152 = vmatmul.bf16.gmra.mxu0 %v76
  %v153 = vpop.f32.mrf.mxu0
  %v154 = vadd.f32 0.0, %v153
  %v155 = vpop.f32.mrf.mxu0
  %v156 = vadd.f32 0.0, %v155
  %157 = vmatmul.bf16.gmra.mxu0 %v77
  %v158 = vpop.f32.mrf.mxu0
  %v159 = vadd.f32 0.0, %v158
  %v160 = vpop.f32.mrf.mxu0
  %v161 = vadd.f32 0.0, %v160
  %162 = vmatmul.bf16.gmra.mxu0 %v78
  %v163 = vpop.f32.mrf.mxu0
  %v164 = vadd.f32 0.0, %v163
  %v165 = vpop.f32.mrf.mxu0
  %v166 = vadd.f32 0.0, %v165
  %167 = vmatmul.bf16.gmra.mxu0 %v79
  %v168 = vpop.f32.mrf.mxu0
  %v169 = vadd.f32 0.0, %v168
  %v170 = vpop.f32.mrf.mxu0
  %v171 = vadd.f32 0.0, %v170
  %172 = vmatmul.bf16.gmra.mxu0 %v80
  %v173 = vpop.f32.mrf.mxu0
  %v174 = vadd.f32 0.0, %v173
  %v175 = vpop.f32.mrf.mxu0
  %v176 = vadd.f32 0.0, %v175
  %177 = vmatmul.bf16.gmra.mxu0 %v81
  %v178 = vpop.f32.mrf.mxu0
  %v179 = vadd.f32 0.0, %v178
  %v180 = vpop.f32.mrf.mxu0
  %v181 = vadd.f32 0.0, %v180
  %182 = vmatmul.bf16.gmra.mxu0 %v82
  %v183 = vpop.f32.mrf.mxu0
  %v184 = vadd.f32 0.0, %v183
  %v185 = vpop.f32.mrf.mxu0
  %v186 = vadd.f32 0.0, %v185
  %187 = vdwg.mxu0
  %v188 = vpack.c.bf16 %v149, %v149
  %v189 = vpack.c.bf16 %v151, %v151
  %v190 = vpack.c.bf16 %v154, %v154
  %v191 = vpack.c.bf16 %v156, %v156
  %v192 = vpack.c.bf16 %v159, %v159
  %v193 = vpack.c.bf16 %v161, %v161
  %v194 = vpack.c.bf16 %v164, %v164
  %v195 = vpack.c.bf16 %v166, %v166
  %v196 = vpack.c.bf16 %v169, %v169
  %v197 = vpack.c.bf16 %v171, %v171
  %v198 = vpack.c.bf16 %v174, %v174
  %v199 = vpack.c.bf16 %v176, %v176
  %v200 = vpack.c.bf16 %v179, %v179
  %v201 = vpack.c.bf16 %v181, %v181
  %v202 = vpack.c.bf16 %v184, %v184
  %v203 = vpack.c.bf16 %v186, %v186
  %204 = vst [vmem:[%s2] sm:$0xf] %v188
  %205 = vst [vmem:[%s2 + $0x4] sm:$0xf] %v189
  %206 = vst [vmem:[%s2 + $0x8] sm:$0xf] %v190
  %207 = vst [vmem:[%s2 + $0xc] sm:$0xf] %v191
  %208 = vst [vmem:[%s2 + $0x10] sm:$0xf] %v192
  %209 = vst [vmem:[%s2 + $0x14] sm:$0xf] %v193
  %210 = vst [vmem:[%s2 + $0x18] sm:$0xf] %v194
  %211 = vst [vmem:[%s2 + $0x1c] sm:$0xf] %v195
  %212 = vst [vmem:[%s2 + $0x20] sm:$0xf] %v196
  %213 = vst [vmem:[%s2 + $0x24] sm:$0xf] %v197
  %214 = vst [vmem:[%s2 + $0x28] sm:$0xf] %v198
  %215 = vst [vmem:[%s2 + $0x2c] sm:$0xf] %v199
  %216 = vst [vmem:[%s2 + $0x30] sm:$0xf] %v200
  %217 = vst [vmem:[%s2 + $0x34] sm:$0xf] %v201
  %218 = vst [vmem:[%s2 + $0x38] sm:$0xf] %v202
  %219 = vst [vmem:[%s2 + $0x3c] sm:$0xf] %v203
  // Predicated region
  $region10: #{gnn_city_predictor.4} parent=0 // pred_check
    _
  $region11: #{gnn_city_predictor.4} parent=0 // pred_check_branch
    %221 = sbr.rel (0) target = $region13
  $region12: #{gnn_city_predictor.4} parent=0 // pred_region
    _
  $region13: #{gnn_city_predictor.4} parent=0 // pred_fallthru
    _
  // Predicated region
  $region14: #{gnn_city_predictor.4} parent=0 // pred_check
    _
  $region15: #{gnn_city_predictor.4} parent=0 // pred_check_branch
    %223 = sbr.rel (0) target = $region17
  $region16: #{gnn_city_predictor.4} parent=0 // pred_region
    _
  $region17: #{gnn_city_predictor.4} parent=0 // pred_fallthru
    _

</llo_original>
